<compile_context>
chip_gen: v7x
topology: tpu7x:2x2x1
jax: 0.10.0
libtpu: 0.0.40
codegen_flags: <defaults>
</compile_context>

<pallas_src>
import jax
import jax.numpy as jnp
from jax import lax
from jax.experimental import pallas as pl
from jax.experimental.pallas import tpu as pltpu


def _round_up(x, m):
    return ((x + m - 1) // m) * m


def _chip_config():
    """Return (num_tensorcores_per_chip, vmem_limit_bytes) with safe fallbacks."""
    vmem_cap = 128 * 1024 * 1024
    try:
        info = pltpu.get_tpu_info()
        vmem_cap = int(getattr(info, "vmem_capacity_bytes", vmem_cap))
    except Exception:
        pass
    kind = ""
    try:
        kind = jax.devices()[0].device_kind.lower()
    except Exception:
        pass
    num_tc = 2 if "v7" in kind else 1          # v7x: 2 TensorCores / chip
    # v5e/v6e: 128 MiB physical -> ~96 MiB; v7x: 64 MiB physical -> ~48 MiB.
    vmem_limit = int(min(96 * 1024 * 1024, (vmem_cap * 3) // 4))
    return num_tc, vmem_limit


def gcn_encoder_kernel(mention_ref, edges_ref, emask_ref, mmask_ref,
                       w_t_ref, b_ref, out_ref):
    """One grid step processes R = bb*Mp flattened mention rows.

    mention_ref: (R, Dp)   mxu dtype (bf16 or f32)
    edges_ref:   (R, E)    int32, already offset to block-local row indices
    emask_ref:   (R, E)    f32
    mmask_ref:   (R, 1)    f32
    w_t_ref:     (Dp, Dp)  mxu dtype   (x @ W^T == x @ w_t)
    b_ref:       (1, Dp)   f32
    out_ref:     (R, Dp)
    """
    r = mention_ref.shape[0]
    e_max = edges_ref.shape[1]
    mxu_dtype = w_t_ref.dtype

    # Block-diagonal aggregation matrix over all bb folded batches:
    #   A[m, k] = sum_e edge_mask[m, e] * (edges[m, e] == k),  k in [0, R).
    # Built with E fused select+add passes over one [R, R] f32 tile (VPU only,
    # peak intermediate O(R^2), no 3-D one-hot / 3-D reduce); the k-contraction
    # then runs as a single full-depth MXU matmul.
    col = lax.broadcasted_iota(jnp.int32, (r, r), 1)
    idx = edges_ref[...]
    em = emask_ref[...]
    acc = jnp.zeros((r, r), jnp.float32)
    for e in range(e_max):
        acc = acc + jnp.where(idx[:, e:e + 1] == col, em[:, e:e + 1], 0.0)

    # Masked gather-sum over edges == A @ mention_emb (f32 accumulation).
    summed = jnp.dot(acc.astype(mxu_dtype), mention_ref[...],
                     preferred_element_type=jnp.float32)          # [R, Dp]

    # Linear + ReLU (eval-mode dropout == identity) + mention mask; one
    # lane-dense full-tile store.
    lin = jnp.dot(summed.astype(mxu_dtype), w_t_ref[...],
                  preferred_element_type=jnp.float32) + b_ref[...]
    out_ref[...] = (jnp.maximum(lin, 0.0) * mmask_ref[...]).astype(out_ref.dtype)


def gcn_encoder_forward(mention_emb, mention_mask_float, edges, edge_mask_float,
                        weight, bias, *, use_bf16=True, out_dtype=jnp.float32):
    """mention_emb: [B, M, D]; mention_mask_float: [B, M];
    edges: [B, M, E] int32; edge_mask_float: [B, M, E];
    weight: [D, D] (PyTorch Linear weight, y = x @ W.T + b); bias: [D].
    use_bf16: feed the two MXU matmuls with bf16 inputs (f32 accumulation).
    out_dtype: output dtype (jnp.bfloat16 halves the largest HBM stream)."""
    B, M, D = mention_emb.shape
    E = edges.shape[2]
    f32 = jnp.float32
    mxu_dtype = jnp.bfloat16 if use_bf16 else f32

    # Pad M to sublane multiple, D to lane multiple (lane-dense output / full
    # MXU columns). Padded rows/cols are zeroed and sliced off at the end.
    Mp = _round_up(M, 8)
    Dp = _round_up(D, 128)

    num_tc, vmem_limit = _chip_config()

    # Batch folding: present >= 256 rows per MXU call; only cap to >= num_tc
    # grid steps when the chip actually has multiple TensorCores (v7x).
    row_target = 256
    bb = min(max(1, -(-row_target // Mp)), B)        # ceil(row_target / Mp), <= B
    if num_tc > 1 and B >= num_tc:
        bb = max(1, min(bb, B // num_tc))
    grid_b = -(-B // bb)                             # ceil(B / bb)
    Bp = grid_b * bb
    R = bb * Mp                                      # rows per grid step

    # Pad + flatten everything to 2-D slabs (single lane-dense block per step).
    mention_p = jnp.zeros((Bp, Mp, Dp), mxu_dtype).at[:B, :M, :D].set(
        mention_emb.astype(mxu_dtype)).reshape(Bp * Mp, Dp)
    # Block-local row offsets so one block-diagonal A covers all bb batches.
    off = ((jnp.arange(Bp, dtype=jnp.int32) % bb) * Mp)[:, None, None]
    edges_p = (jnp.zeros((Bp, Mp, E), jnp.int32).at[:B, :M, :].set(
        edges.astype(jnp.int32)) + off).reshape(Bp * Mp, E)
    emask_p = jnp.zeros((Bp, Mp, E), f32).at[:B, :M, :].set(
        edge_mask_float.astype(f32)).reshape(Bp * Mp, E)
    mmask_p = jnp.zeros((Bp, Mp, 1), f32).at[:B, :M, :].set(
        mention_mask_float.astype(f32).reshape(B, M, 1)).reshape(Bp * Mp, 1)
    w_t_p = jnp.zeros((Dp, Dp), mxu_dtype).at[:D, :D].set(
        jnp.transpose(weight).astype(mxu_dtype))
    b_p = jnp.zeros((1, Dp), f32).at[0, :D].set(bias.astype(f32))

    # TODO(synk): for very large emb_size on v7x (64 MiB VMEM), tile w_t over an
    # extra N/K grid axis instead of keeping one resident (Dp, Dp) block.
    out_p = pl.pallas_call(
        gcn_encoder_kernel,
        out_shape=jax.ShapeDtypeStruct((Bp * Mp, Dp), out_dtype),
        grid_spec=pltpu.PrefetchScalarGridSpec(
            num_scalar_prefetch=0,
            grid=(grid_b,),
            in_specs=[
                pl.BlockSpec((R, Dp), lambda g: (g, 0)),
                pl.BlockSpec((R, E), lambda g: (g, 0)),
                pl.BlockSpec((R, E), lambda g: (g, 0)),
                pl.BlockSpec((R, 1), lambda g: (g, 0)),
                pl.BlockSpec((Dp, Dp), lambda g: (0, 0)),
                pl.BlockSpec((1, Dp), lambda g: (0, 0)),
            ],
            out_specs=pl.BlockSpec((R, Dp), lambda g: (g, 0)),
        ),
        compiler_params=pltpu.CompilerParams(
            dimension_semantics=("parallel",),
            vmem_limit_bytes=vmem_limit,
        ),
    )(mention_p, edges_p, emask_p, mmask_p, w_t_p, b_p)

    return out_p.reshape(Bp, Mp, Dp)[:B, :M, :D]


def gcn_encoder_reference(mention_emb, mention_mask_float, edges, edge_mask_float,
                          weight, bias):
    """Pure-JAX reference mirroring the PyTorch forward (eval mode)."""
    gathered = jnp.take_along_axis(
        mention_emb[:, None, :, :],                      # [B, 1, M, D]
        edges[:, :, :, None],                            # [B, M, E, 1]
        axis=2)                                          # [B, M, E, D]
    edge_emb = gathered * edge_mask_float[:, :, :, None]
    summed = edge_emb.sum(axis=2)                        # [B, M, D]
    lin = summed @ weight.T + bias
    act = jnp.maximum(lin, 0.0)
    return act * mention_mask_float[:, :, None]


if __name__ == "__main__":
    key = jax.random.PRNGKey(0)
    B, M, E, D = 2, 8, 4, 32  # batch, mention_max_size, edge_max_size, emb_size

    k1, k2, k3, k4, k5, k6 = jax.random.split(key, 6)
    mention_emb = jax.random.normal(k1, (B, M, D), dtype=jnp.float32)
    mention_mask = (jax.random.uniform(k2, (B, M)) > 0.3).astype(jnp.float32)
    edges = jax.random.randint(k3, (B, M, E), 0, M, dtype=jnp.int32)
    edge_mask = (jax.random.uniform(k4, (B, M, E)) > 0.3).astype(jnp.float32)

    # Deterministic Linear(emb_size, emb_size) params.
    weight = jax.random.normal(k5, (D, D), dtype=jnp.float32) * (1.0 / jnp.sqrt(D))
    bias = jax.random.normal(k6, (D,), dtype=jnp.float32) * 0.01

    ref = gcn_encoder_reference(mention_emb, mention_mask, edges, edge_mask,
                                weight, bias)

    # f32 MXU path: matches reference up to accumulation order.
    out_f32 = jax.block_until_ready(
        gcn_encoder_forward(mention_emb, mention_mask, edges, edge_mask,
                            weight, bias, use_bf16=False))
    assert out_f32.shape == (B, M, D)
    assert jnp.allclose(out_f32, ref, atol=1e-4, rtol=1e-4), "f32 mismatch vs reference"

    # bf16 MXU path (default): relaxed tolerance for bf16 input rounding.
    out_bf16 = jax.block_until_ready(
        gcn_encoder_forward(mention_emb, mention_mask, edges, edge_mask,
                            weight, bias, use_bf16=True))
    assert out_bf16.shape == (B, M, D)
    assert jnp.allclose(out_bf16, ref, atol=1e-1, rtol=1e-1), "bf16 mismatch vs reference"

    print("KERNEL_OK")
</pallas_src>

<mosaic_0001>
module attributes {stable_mosaic.version = 11 : i64} {
  func.func @gcn_encoder_kernel(%arg0: i32, %arg1: memref<16x128xf32, #tpu.memory_space<vmem>>, %arg2: memref<16x4xi32, #tpu.memory_space<vmem>>, %arg3: memref<16x4xf32, #tpu.memory_space<vmem>>, %arg4: memref<16x1xf32, #tpu.memory_space<vmem>>, %arg5: memref<128x128xf32, #tpu.memory_space<vmem>>, %arg6: memref<1x128xf32, #tpu.memory_space<vmem>>, %arg7: memref<16x128xf32, #tpu.memory_space<vmem>>) attributes {dimension_semantics = [#tpu.dimension_semantics<parallel>], iteration_bounds = array<i64: 1>, scalar_prefetch = 0 : i64, scratch_operands = 0 : i64, tpu.core_type = #tpu.core_type<tc>, window_params = [{transform_indices = @transform_0, window_bounds = array<i64: 16, 128>}, {transform_indices = @transform_1, window_bounds = array<i64: 16, 4>}, {transform_indices = @transform_2, window_bounds = array<i64: 16, 4>}, {transform_indices = @transform_3, window_bounds = array<i64: 16, 1>}, {pipeline_mode = #tpu.pipeline_mode<synchronous>, transform_indices = @transform_4, window_bounds = array<i64: 128, 128>}, {pipeline_mode = #tpu.pipeline_mode<synchronous>, transform_indices = @transform_5, window_bounds = array<i64: 1, 128>}, {transform_indices = @transform_6, window_bounds = array<i64: 16, 128>}]} {
    %0 = tpu.iota {dimensions = array<i32: 1>} : vector<16x16xi32>
    %c0 = arith.constant 0 : index
    %c0_0 = arith.constant 0 : index
    %1 = vector.load %arg2[%c0, %c0_0] : memref<16x4xi32, #tpu.memory_space<vmem>>, vector<16x4xi32>
    %c0_1 = arith.constant 0 : index
    %c0_2 = arith.constant 0 : index
    %2 = vector.load %arg3[%c0_1, %c0_2] : memref<16x4xf32, #tpu.memory_space<vmem>>, vector<16x4xf32>
    %cst = arith.constant 0.000000e+00 : f32
    %3 = vector.broadcast %cst : f32 to vector<16x16xf32>
    %4 = vector.extract_strided_slice %1 {offsets = [0, 0], sizes = [16, 1], strides = [1, 1]} : vector<16x4xi32> to vector<16x1xi32>
    %5 = vector.broadcast %4 : vector<16x1xi32> to vector<16x16xi32>
    %6 = arith.cmpi eq, %5, %0 : vector<16x16xi32>
    %7 = vector.extract_strided_slice %2 {offsets = [0, 0], sizes = [16, 1], strides = [1, 1]} : vector<16x4xf32> to vector<16x1xf32>
    %cst_3 = arith.constant 0.000000e+00 : f32
    %8 = vector.shape_cast %7 : vector<16x1xf32> to vector<16x1xf32>
    %9 = vector.broadcast %8 : vector<16x1xf32> to vector<16x16xf32>
    %10 = vector.broadcast %cst_3 : f32 to vector<16x16xf32>
    %11 = arith.select %6, %9, %10 : vector<16x16xi1>, vector<16x16xf32>
    %12 = arith.addf %3, %11 : vector<16x16xf32>
    %13 = vector.extract_strided_slice %1 {offsets = [0, 1], sizes = [16, 1], strides = [1, 1]} : vector<16x4xi32> to vector<16x1xi32>
    %14 = vector.broadcast %13 : vector<16x1xi32> to vector<16x16xi32>
    %15 = arith.cmpi eq, %14, %0 : vector<16x16xi32>
    %16 = vector.extract_strided_slice %2 {offsets = [0, 1], sizes = [16, 1], strides = [1, 1]} : vector<16x4xf32> to vector<16x1xf32>
    %cst_4 = arith.constant 0.000000e+00 : f32
    %17 = vector.shape_cast %16 : vector<16x1xf32> to vector<16x1xf32>
    %18 = vector.broadcast %17 : vector<16x1xf32> to vector<16x16xf32>
    %19 = vector.broadcast %cst_4 : f32 to vector<16x16xf32>
    %20 = arith.select %15, %18, %19 : vector<16x16xi1>, vector<16x16xf32>
    %21 = arith.addf %12, %20 : vector<16x16xf32>
    %22 = vector.extract_strided_slice %1 {offsets = [0, 2], sizes = [16, 1], strides = [1, 1]} : vector<16x4xi32> to vector<16x1xi32>
    %23 = vector.broadcast %22 : vector<16x1xi32> to vector<16x16xi32>
    %24 = arith.cmpi eq, %23, %0 : vector<16x16xi32>
    %25 = vector.extract_strided_slice %2 {offsets = [0, 2], sizes = [16, 1], strides = [1, 1]} : vector<16x4xf32> to vector<16x1xf32>
    %cst_5 = arith.constant 0.000000e+00 : f32
    %26 = vector.shape_cast %25 : vector<16x1xf32> to vector<16x1xf32>
    %27 = vector.broadcast %26 : vector<16x1xf32> to vector<16x16xf32>
    %28 = vector.broadcast %cst_5 : f32 to vector<16x16xf32>
    %29 = arith.select %24, %27, %28 : vector<16x16xi1>, vector<16x16xf32>
    %30 = arith.addf %21, %29 : vector<16x16xf32>
    %31 = vector.extract_strided_slice %1 {offsets = [0, 3], sizes = [16, 1], strides = [1, 1]} : vector<16x4xi32> to vector<16x1xi32>
    %32 = vector.broadcast %31 : vector<16x1xi32> to vector<16x16xi32>
    %33 = arith.cmpi eq, %32, %0 : vector<16x16xi32>
    %34 = vector.extract_strided_slice %2 {offsets = [0, 3], sizes = [16, 1], strides = [1, 1]} : vector<16x4xf32> to vector<16x1xf32>
    %cst_6 = arith.constant 0.000000e+00 : f32
    %35 = vector.shape_cast %34 : vector<16x1xf32> to vector<16x1xf32>
    %36 = vector.broadcast %35 : vector<16x1xf32> to vector<16x16xf32>
    %37 = vector.broadcast %cst_6 : f32 to vector<16x16xf32>
    %38 = arith.select %33, %36, %37 : vector<16x16xi1>, vector<16x16xf32>
    %39 = arith.addf %30, %38 : vector<16x16xf32>
    %c0_7 = arith.constant 0 : index
    %c0_8 = arith.constant 0 : index
    %40 = vector.load %arg1[%c0_7, %c0_8] : memref<16x128xf32, #tpu.memory_space<vmem>>, vector<16x128xf32>
    %cst_9 = arith.constant dense<0.000000e+00> : vector<16x128xf32>
    %41 = tpu.matmul %39, %40, %cst_9 {dimension_numbers = #tpu.dot_dimension_numbers<[1], [0], [0], [1], [0, 0, 1, 1], [], []>} : vector<16x16xf32>, vector<16x128xf32>, vector<16x128xf32> -> vector<16x128xf32>
    %c0_10 = arith.constant 0 : index
    %c0_11 = arith.constant 0 : index
    %42 = vector.load %arg5[%c0_10, %c0_11] : memref<128x128xf32, #tpu.memory_space<vmem>>, vector<128x128xf32>
    %cst_12 = arith.constant dense<0.000000e+00> : vector<16x128xf32>
    %43 = tpu.matmul %41, %42, %cst_12 {dimension_numbers = #tpu.dot_dimension_numbers<[1], [0], [0], [1], [0, 0, 1, 1], [], []>} : vector<16x128xf32>, vector<128x128xf32>, vector<16x128xf32> -> vector<16x128xf32>
    %c0_13 = arith.constant 0 : index
    %c0_14 = arith.constant 0 : index
    %44 = vector.load %arg6[%c0_13, %c0_14] : memref<1x128xf32, #tpu.memory_space<vmem>>, vector<1x128xf32>
    %45 = vector.broadcast %44 : vector<1x128xf32> to vector<16x128xf32>
    %46 = arith.addf %43, %45 : vector<16x128xf32>
    %cst_15 = arith.constant 0.000000e+00 : f32
    %47 = vector.broadcast %cst_15 : f32 to vector<16x128xf32>
    %48 = arith.maximumf %46, %47 : vector<16x128xf32>
    %c0_16 = arith.constant 0 : index
    %c0_17 = arith.constant 0 : index
    %49 = vector.load %arg4[%c0_16, %c0_17] : memref<16x1xf32, #tpu.memory_space<vmem>>, vector<16x1xf32>
    %50 = vector.broadcast %49 : vector<16x1xf32> to vector<16x128xf32>
    %51 = arith.mulf %48, %50 : vector<16x128xf32>
    %c0_18 = arith.constant 0 : index
    %c0_19 = arith.constant 0 : index
    %52 = vector.load %arg7[%c0_18, %c0_19] : memref<16x128xf32, #tpu.memory_space<vmem>>, vector<16x128xf32>
    tpu.vector_store %arg7[%c0_18, %c0_19], %51 {strides = array<i32>} : memref<16x128xf32, #tpu.memory_space<vmem>>, vector<16x128xf32>,
    return
  }
  func.func @transform_0(%arg0: i32) -> (i32, i32) {
    %c0_i32 = arith.constant 0 : i32
    %c0_i32_0 = arith.constant 0 : i32
    return %arg0, %c0_i32 : i32, i32
  }
  func.func @transform_1(%arg0: i32) -> (i32, i32) {
    %c0_i32 = arith.constant 0 : i32
    %c0_i32_0 = arith.constant 0 : i32
    return %arg0, %c0_i32 : i32, i32
  }
  func.func @transform_2(%arg0: i32) -> (i32, i32) {
    %c0_i32 = arith.constant 0 : i32
    %c0_i32_0 = arith.constant 0 : i32
    return %arg0, %c0_i32 : i32, i32
  }
  func.func @transform_3(%arg0: i32) -> (i32, i32) {
    %c0_i32 = arith.constant 0 : i32
    %c0_i32_0 = arith.constant 0 : i32
    return %arg0, %c0_i32 : i32, i32
  }
  func.func @transform_4(%arg0: i32) -> (i32, i32) {
    %c0_i32 = arith.constant 0 : i32
    %c0_i32_0 = arith.constant 0 : i32
    %c0_i32_1 = arith.constant 0 : i32
    return %c0_i32, %c0_i32_0 : i32, i32
  }
  func.func @transform_5(%arg0: i32) -> (i32, i32) {
    %c0_i32 = arith.constant 0 : i32
    %c0_i32_0 = arith.constant 0 : i32
    %c0_i32_1 = arith.constant 0 : i32
    return %c0_i32, %c0_i32_0 : i32, i32
  }
  func.func @transform_6(%arg0: i32) -> (i32, i32) {
    %c0_i32 = arith.constant 0 : i32
    %c0_i32_0 = arith.constant 0 : i32
    return %arg0, %c0_i32 : i32, i32
  }
}

</mosaic_0001>

<llo_original>
// kernel: tpu_custom_call.1
$region0: #{tpu_custom_call.1}
  #allocation0 [shape = 'u32[]', space=smem, size = 0x4, offset = 0x4, fixed_abs, tag = 'smem constant byte address 0x4 - core index']
  #allocation1 [shape = 'u32[144,128]{1,0:T(1,128)}', space=vmem, size = 0x12000, scoped, tag = 'internal scratch']
  %s0 = inlined_call_operand.hbm [shape: f32[16,128], index: 0, kind: input, shape index: {}]
  %s1 = inlined_call_operand.hbm [shape: s32[16,4], index: 1, kind: input, shape index: {}]
  %s2 = inlined_call_operand.hbm [shape: f32[16,4], index: 2, kind: input, shape index: {}]
  %s3 = inlined_call_operand.hbm [shape: f32[16,1], index: 3, kind: input, shape index: {}]
  %s4 = inlined_call_operand.hbm [shape: f32[128,128], index: 4, kind: input, shape index: {}]
  %s5 = inlined_call_operand.hbm [shape: f32[1,128], index: 5, kind: input, shape index: {}]
  %s6 = inlined_call_operand.hbm [shape: f32[16,128], index: 6, kind: output, shape index: {}]
  %s7 = sld [smem:[#allocation0]]
  $region58: #{tpu_custom_call.1} parent=0
    _
  %s9 = ssub.s32 1, %s7
  %s10 = scalar_select 0, %s9, %s7
  $region1: #{tpu_custom_call.1} parent=0
    #allocation2 [shape = 'u8[8192]{0}', space=vmem, size = 0x2000, scoped, tag = 'input window, operand 0, single buffered']
    #allocation3 [shape = 's32[1]{0}', space=sflag, size = 0x4, scoped, tag = 'scoped memory for tpu_custom_call.1']
    #allocation4 [shape = 's32[1]{0}', space=sflag, size = 0x4, scoped, tag = 'scoped memory for tpu_custom_call.1']
    #allocation5 [shape = 'u8[8192]{0}', space=vmem, size = 0x2000, scoped, tag = 'input window, operand 1, single buffered']
    #allocation6 [shape = 's32[1]{0}', space=sflag, size = 0x4, scoped, tag = 'scoped memory for tpu_custom_call.1']
    #allocation7 [shape = 'u8[8192]{0}', space=vmem, size = 0x2000, scoped, tag = 'input window, operand 2, single buffered']
    #allocation8 [shape = 'u8[8192]{0}', space=vmem, size = 0x2000, scoped, tag = 'input window, operand 3, single buffered']
    #allocation9 [shape = 's32[1]{0}', space=sflag, size = 0x4, scoped, tag = 'scoped memory for tpu_custom_call.1']
    #allocation10 [shape = 'u8[65536]{0}', space=vmem, size = 0x10000, scoped, tag = 'input window, operand 4, single buffered']
    #allocation11 [shape = 'u8[512]{0}', space=vmem, size = 0x400, scoped, tag = 'input window, operand 5, single buffered']
    #allocation12 [shape = 's32[1]{0}', space=sflag, size = 0x4, scoped, tag = 'scoped memory for tpu_custom_call.1']
    #allocation13 [shape = 'u8[8192]{0}', space=vmem, size = 0x2000, scoped, tag = 'output window, operand 0, single buffered']
    %11 = vsyncpa [#allocation3], 0
    %12 = vsyncpa [#allocation6], 0
    %13 = vsyncpa [#allocation9], 0
    %14 = vsyncpa [#allocation12], 0
    %15 = vsyncpa [#allocation4], 0
    // Predicated region
    $region2: #{tpu_custom_call.1} parent=1 // pred_check
      _
    $region3: #{tpu_custom_call.1} parent=1 // pred_check_branch
      %17 = sbr.rel (0) target = $region5
    $region4: #{tpu_custom_call.1} parent=1 // pred_region
      %s19 = ssub.s32 256, 256
      %20 = vsyncadd [#allocation3], %s19
      %s21 = sshll.u32 [#allocation2], 4
      %s22 = int_to_ptr.vmem [resolvable:$true] %s21
      %27 = dma.hbm_to_vmem [thread:$0]  %s0, 256, %s22, [#allocation3], 128, 128, 8
    $region5: #{tpu_custom_call.1} parent=1 // pred_fallthru
      _
    // Predicated region
    $region6: #{tpu_custom_call.1} parent=1 // pred_check
      _
    $region7: #{tpu_custom_call.1} parent=1 // pred_check_branch
      %29 = sbr.rel (0) target = $region9
    $region8: #{tpu_custom_call.1} parent=1 // pred_region
      %s31 = ssub.s32 256, 256
      %32 = vsyncadd [#allocation6], %s31
      %s33 = sshll.u32 [#allocation5], 4
      %s34 = int_to_ptr.vmem [resolvable:$true] %s33
      %39 = dma.hbm_to_vmem [thread:$0]  %s1, 256, %s34, [#allocation6], 128, 128, 8
    $region9: #{tpu_custom_call.1} parent=1 // pred_fallthru
      _
    // Predicated region
    $region10: #{tpu_custom_call.1} parent=1 // pred_check
      _
    $region11: #{tpu_custom_call.1} parent=1 // pred_check_branch
      %41 = sbr.rel (0) target = $region13
    $region12: #{tpu_custom_call.1} parent=1 // pred_region
      %s43 = ssub.s32 256, 256
      %44 = vsyncadd [#allocation6], %s43
      %s45 = sshll.u32 [#allocation7], 4
      %s46 = int_to_ptr.vmem [resolvable:$true] %s45
      %51 = dma.hbm_to_vmem [thread:$0]  %s2, 256, %s46, [#allocation6], 128, 128, 8
    $region13: #{tpu_custom_call.1} parent=1 // pred_fallthru
      _
    // Predicated region
    $region14: #{tpu_custom_call.1} parent=1 // pred_check
      _
    $region15: #{tpu_custom_call.1} parent=1 // pred_check_branch
      %53 = sbr.rel (0) target = $region17
    $region16: #{tpu_custom_call.1} parent=1 // pred_region
      %s55 = ssub.s32 256, 256
      %56 = vsyncadd [#allocation9], %s55
      %s57 = sshll.u32 [#allocation8], 4
      %s58 = int_to_ptr.vmem [resolvable:$true] %s57
      %63 = dma.hbm_to_vmem [thread:$0]  %s3, 256, %s58, [#allocation9], 128, 128, 8
    $region17: #{tpu_custom_call.1} parent=1 // pred_fallthru
      _
    // Predicated region
    $region18: #{tpu_custom_call.1} parent=1 // pred_check
      _
    $region19: #{tpu_custom_call.1} parent=1 // pred_check_branch
      %65 = sbr.rel (0) target = $region21
    $region20: #{tpu_custom_call.1} parent=1 // pred_region
      %s67 = ssub.s32 2048, 2048
      %68 = vsyncadd [#allocation9], %s67
      %s69 = sshll.u32 [#allocation10], 4
      %s70 = int_to_ptr.vmem [resolvable:$true] %s69
      %75 = dma.hbm_to_vmem [thread:$0]  %s4, 2048, %s70, [#allocation9], 128, 128, 8
    $region21: #{tpu_custom_call.1} parent=1 // pred_fallthru
      _
    // Predicated region
    $region22: #{tpu_custom_call.1} parent=1 // pred_check
      _
    $region23: #{tpu_custom_call.1} parent=1 // pred_check_branch
      %77 = sbr.rel (0) target = $region25
    $region24: #{tpu_custom_call.1} parent=1 // pred_region
      %s79 = ssub.s32 16, 16
      %80 = vsyncadd [#allocation12], %s79
      %s82 = sshll.u32 [#allocation11], 4
      %s83 = int_to_ptr.vmem [resolvable:$true] %s82
      %85 = dma.hbm_to_vmem [thread:$0]  %s5, 16, %s83, [#allocation12]
    $region25: #{tpu_custom_call.1} parent=1 // pred_fallthru
      _
    // Predicated region
    $region26: #{tpu_custom_call.1} parent=1 // pred_check
      _
    $region27: #{tpu_custom_call.1} parent=1 // pred_check_branch
      %87 = sbr.rel (0) target = $region29
    $region28: #{tpu_custom_call.1} parent=1 // pred_region
      %88 = dma.done [#allocation3], 256
    $region29: #{tpu_custom_call.1} parent=1 // pred_fallthru
      _
    // Predicated region
    $region30: #{tpu_custom_call.1} parent=1 // pred_check
      _
    $region31: #{tpu_custom_call.1} parent=1 // pred_check_branch
      %90 = sbr.rel (0) target = $region33
    $region32: #{tpu_custom_call.1} parent=1 // pred_region
      %91 = dma.done [#allocation6], 256
    $region33: #{tpu_custom_call.1} parent=1 // pred_fallthru
      _
    // Predicated region
    $region34: #{tpu_custom_call.1} parent=1 // pred_check
      _
    $region35: #{tpu_custom_call.1} parent=1 // pred_check_branch
      %93 = sbr.rel (0) target = $region37
    $region36: #{tpu_custom_call.1} parent=1 // pred_region
      %94 = dma.done [#allocation6], 256
    $region37: #{tpu_custom_call.1} parent=1 // pred_fallthru
      _
    // Predicated region
    $region38: #{tpu_custom_call.1} parent=1 // pred_check
      _
    $region39: #{tpu_custom_call.1} parent=1 // pred_check_branch
      %96 = sbr.rel (0) target = $region41
    $region40: #{tpu_custom_call.1} parent=1 // pred_region
      %97 = dma.done [#allocation9], 256
    $region41: #{tpu_custom_call.1} parent=1 // pred_fallthru
      _
    // Predicated region
    $region42: #{tpu_custom_call.1} parent=1 // pred_check
      _
    $region43: #{tpu_custom_call.1} parent=1 // pred_check_branch
      %99 = sbr.rel (0) target = $region45
    $region44: #{tpu_custom_call.1} parent=1 // pred_region
      %100 = dma.done [#allocation9], 2048
    $region45: #{tpu_custom_call.1} parent=1 // pred_fallthru
      _
    // Predicated region
    $region46: #{tpu_custom_call.1} parent=1 // pred_check
      _
    $region47: #{tpu_custom_call.1} parent=1 // pred_check_branch
      %102 = sbr.rel (0) target = $region49
    $region48: #{tpu_custom_call.1} parent=1 // pred_region
      %103 = dma.done [#allocation12], 16
    $region49: #{tpu_custom_call.1} parent=1 // pred_fallthru
      _
    %v104 = vlaneseq
    %v105 = vand.u32 %v104, 127
    %v106 = vld [vmem:[#allocation5] sm:$0xff]
    %v107 = vld [vmem:[#allocation5 + $0x8] sm:$0xff]
    %v108 = vld [vmem:[#allocation7] sm:$0xff]
    %v109 = vld [vmem:[#allocation7 + $0x8] sm:$0xff]
    %110 = vset.pattern.permute.xlu0 0
    %111 = vperm.xlu0 %110, %v106
    %v112 = vpop.permute.xlu0 %111
    %113 = vset.pattern.permute.xlu0 0
    %114 = vperm.xlu0 %113, %v107
    %v115 = vpop.permute.xlu0 %114
    %vm116 = vcmp.eq.s32.totalorder %v112, %v105
    %vm117 = vcmp.eq.s32.totalorder %v115, %v105
    %119 = vset.pattern.permute.xlu0 0
    %120 = vperm.xlu0 %119, %v108
    %v121 = vpop.permute.xlu0 %120
    %124 = vset.pattern.permute.xlu0 0
    %125 = vperm.xlu0 %124, %v109
    %v126 = vpop.permute.xlu0 %125
    %v128 = vsel %vm116, %v121, 0.0
    %v129 = vsel %vm117, %v126, 0.0
    %v130 = vadd.f32 %v128, 0.0
    %v131 = vadd.f32 %v129, 0.0
    %132 = vset.pattern.permute.xlu0 1
    %133 = vperm.xlu0 %132, %v106
    %v134 = vpop.permute.xlu0 %133
    %135 = vset.pattern.permute.xlu0 1
    %136 = vperm.xlu0 %135, %v107
    %v137 = vpop.permute.xlu0 %136
    %vm138 = vcmp.eq.s32.totalorder %v134, %v105
    %vm139 = vcmp.eq.s32.totalorder %v137, %v105
    %140 = vset.pattern.permute.xlu0 1
    %141 = vperm.xlu0 %140, %v108
    %v142 = vpop.permute.xlu0 %141
    %144 = vset.pattern.permute.xlu0 1
    %145 = vperm.xlu0 %144, %v109
    %v146 = vpop.permute.xlu0 %145
    %v148 = vsel %vm138, %v142, 0.0
    %v149 = vsel %vm139, %v146, 0.0
    %v150 = vadd.f32 %v130, %v148
    %v151 = vadd.f32 %v131, %v149
    %152 = vset.pattern.permute.xlu0 2
    %153 = vperm.xlu0 %152, %v106
    %v154 = vpop.permute.xlu0 %153
    %155 = vset.pattern.permute.xlu0 2
    %156 = vperm.xlu0 %155, %v107
    %v157 = vpop.permute.xlu0 %156
    %vm158 = vcmp.eq.s32.totalorder %v154, %v105
    %vm159 = vcmp.eq.s32.totalorder %v157, %v105
    %160 = vset.pattern.permute.xlu0 2
    %161 = vperm.xlu0 %160, %v108
    %v162 = vpop.permute.xlu0 %161
    %164 = vset.pattern.permute.xlu0 2
    %165 = vperm.xlu0 %164, %v109
    %v166 = vpop.permute.xlu0 %165
    %v168 = vsel %vm158, %v162, 0.0
    %v169 = vsel %vm159, %v166, 0.0
    %v170 = vadd.f32 %v150, %v168
    %v171 = vadd.f32 %v151, %v169
    %172 = vset.pattern.permute.xlu0 3
    %173 = vperm.xlu0 %172, %v106
    %v174 = vpop.permute.xlu0 %173
    %175 = vset.pattern.permute.xlu0 3
    %176 = vperm.xlu0 %175, %v107
    %v177 = vpop.permute.xlu0 %176
    %vm178 = vcmp.eq.s32.totalorder %v174, %v105
    %vm179 = vcmp.eq.s32.totalorder %v177, %v105
    %180 = vset.pattern.permute.xlu0 3
    %181 = vperm.xlu0 %180, %v108
    %v182 = vpop.permute.xlu0 %181
    %184 = vset.pattern.permute.xlu0 3
    %185 = vperm.xlu0 %184, %v109
    %v186 = vpop.permute.xlu0 %185
    %v188 = vsel %vm178, %v182, 0.0
    %v189 = vsel %vm179, %v186, 0.0
    %v190 = vadd.f32 %v170, %v188
    %v191 = vadd.f32 %v171, %v189
    %v192 = vld [vmem:[#allocation2] sm:$0xff]
    %v193 = vld [vmem:[#allocation2 + $0x8] sm:$0xff]
    %vm194 = vcmask 130048
    %v196 = vsel %vm194, %v190, 0
    %v199 = vsel %vm194, %v191, 0
    %201 = vmatprep.subr.mxu0 0.0
    %202 = vmatpush1.msra.mxu0 %v192
    %203 = vmatprep.subr.mxu0 0.0
    %204 = vmatpush1.msra.mxu0 %v193
    %205 = vmatprep.subr.mxu0 0.0
    %206 = vmatpush1.msra.mxu0 0.0
    %207 = vmatprep.subr.mxu0 0.0
    %208 = vmatpush1.msra.mxu0 0.0
    %209 = vmatprep.subr.mxu0 0.0
    %210 = vmatpush1.msra.mxu0 0.0
    %211 = vmatprep.subr.mxu0 0.0
    %212 = vmatpush1.msra.mxu0 0.0
    %213 = vmatprep.subr.mxu0 0.0
    %214 = vmatpush1.msra.mxu0 0.0
    %215 = vmatprep.subr.mxu0 0.0
    %216 = vmatpush1.msra.mxu0 0.0
    %217 = vmatprep.subr.mxu0 0.0
    %218 = vmatpush1.msra.mxu0 0.0
    %219 = vmatprep.subr.mxu0 0.0
    %220 = vmatpush1.msra.mxu0 0.0
    %221 = vmatprep.subr.mxu0 0.0
    %222 = vmatpush1.msra.mxu0 0.0
    %223 = vmatprep.subr.mxu0 0.0
    %224 = vmatpush1.msra.mxu0 0.0
    %225 = vmatprep.subr.mxu0 0.0
    %226 = vmatpush1.msra.mxu0 0.0
    %227 = vmatprep.subr.mxu0 0.0
    %228 = vmatpush1.msra.mxu0 0.0
    %229 = vmatprep.subr.mxu0 0.0
    %230 = vmatpush1.msra.mxu0 0.0
    %231 = vmatprep.subr.mxu0 0.0
    %232 = vmatpush1.msra.mxu0 0.0
    %233 = vmatprep.subr.mxu0 0.0
    %234 = vmatpush1.msra.mxu0 0.0
    %235 = vmatprep.subr.mxu0 0.0
    %236 = vmatpush1.msra.mxu0 0.0
    %237 = vmatprep.subr.mxu0 0.0
    %238 = vmatpush1.msra.mxu0 0.0
    %239 = vmatprep.subr.mxu0 0.0
    %240 = vmatpush1.msra.mxu0 0.0
    %241 = vmatprep.subr.mxu0 0.0
    %242 = vmatpush1.msra.mxu0 0.0
    %243 = vmatprep.subr.mxu0 0.0
    %244 = vmatpush1.msra.mxu0 0.0
    %245 = vmatprep.subr.mxu0 0.0
    %246 = vmatpush1.msra.mxu0 0.0
    %247 = vmatprep.subr.mxu0 0.0
    %248 = vmatpush1.msra.mxu0 0.0
    %249 = vmatprep.subr.mxu0 0.0
    %250 = vmatpush1.msra.mxu0 0.0
    %251 = vmatprep.subr.mxu0 0.0
    %252 = vmatpush1.msra.mxu0 0.0
    %253 = vmatprep.subr.mxu0 0.0
    %254 = vmatpush1.msra.mxu0 0.0
    %255 = vmatprep.subr.mxu0 0.0
    %256 = vmatpush1.msra.mxu0 0.0
    %257 = vmatprep.subr.mxu0 0.0
    %258 = vmatpush1.msra.mxu0 0.0
    %259 = vmatprep.subr.mxu0 0.0
    %260 = vmatpush1.msra.mxu0 0.0
    %261 = vmatprep.subr.mxu0 0.0
    %262 = vmatpush1.msra.mxu0 0.0
    %263 = vmatprep.subr.mxu0 0.0
    %264 = vmatpush1.msra.mxu0 0.0
    %265 = vmatprep.mubr.f32.mxu0 0.0
    %266 = vmatmul.mubr.f32.gmra.mrb[0].mxu0 %v196
    %v267 = vpop.f32.mrb[0].mxu0
    %v268 = vadd.f32 0.0, %v267
    %v269 = vpop.f32.mrb[0].mxu0
    %270 = vmatprep.mubr.f32.mxu0 0.0
    %271 = vmatmul.mubr.f32.gmra.mrb[0].mxu0 %v199
    %v272 = vpop.f32.mrb[0].mxu0
    %v273 = vadd.f32 0.0, %v272
    %v274 = vpop.f32.mrb[0].mxu0
    %275 = vdwg.mxu0
    %v276 = vld [vmem:[#allocation10] sm:$0xff]
    %v277 = vld [vmem:[#allocation10 + $0x8] sm:$0xff]
    %v278 = vld [vmem:[#allocation10 + $0x10] sm:$0xff]
    %v279 = vld [vmem:[#allocation10 + $0x18] sm:$0xff]
    %v280 = vld [vmem:[#allocation10 + $0x20] sm:$0xff]
    %v281 = vld [vmem:[#allocation10 + $0x28] sm:$0xff]
    %v282 = vld [vmem:[#allocation10 + $0x30] sm:$0xff]
    %v283 = vld [vmem:[#allocation10 + $0x38] sm:$0xff]
    %v284 = vld [vmem:[#allocation10 + $0x40] sm:$0xff]
    %v285 = vld [vmem:[#allocation10 + $0x48] sm:$0xff]
    %v286 = vld [vmem:[#allocation10 + $0x50] sm:$0xff]
    %v287 = vld [vmem:[#allocation10 + $0x58] sm:$0xff]
    %v288 = vld [vmem:[#allocation10 + $0x60] sm:$0xff]
    %v289 = vld [vmem:[#allocation10 + $0x68] sm:$0xff]
    %v290 = vld [vmem:[#allocation10 + $0x70] sm:$0xff]
    %v291 = vld [vmem:[#allocation10 + $0x78] sm:$0xff]
    %v292 = vld [vmem:[#allocation11] sm:$0x1]
    %v294 = vlaneseq
    %v295 = vshrl.u32 %v294, 7
    %v296 = vsub.s32 0, %v295
    %v297 = vrot.slane %v292, %v296
    %299 = vmatprep.subr.mxu0 0.0
    %300 = vmatpush1.msra.mxu0 %v276
    %301 = vmatprep.subr.mxu0 0.0
    %302 = vmatpush1.msra.mxu0 %v277
    %303 = vmatprep.subr.mxu0 0.0
    %304 = vmatpush1.msra.mxu0 %v278
    %305 = vmatprep.subr.mxu0 0.0
    %306 = vmatpush1.msra.mxu0 %v279
    %307 = vmatprep.subr.mxu0 0.0
    %308 = vmatpush1.msra.mxu0 %v280
    %309 = vmatprep.subr.mxu0 0.0
    %310 = vmatpush1.msra.mxu0 %v281
    %311 = vmatprep.subr.mxu0 0.0
    %312 = vmatpush1.msra.mxu0 %v282
    %313 = vmatprep.subr.mxu0 0.0
    %314 = vmatpush1.msra.mxu0 %v283
    %315 = vmatprep.subr.mxu0 0.0
    %316 = vmatpush1.msra.mxu0 %v284
    %317 = vmatprep.subr.mxu0 0.0
    %318 = vmatpush1.msra.mxu0 %v285
    %319 = vmatprep.subr.mxu0 0.0
    %320 = vmatpush1.msra.mxu0 %v286
    %321 = vmatprep.subr.mxu0 0.0
    %322 = vmatpush1.msra.mxu0 %v287
    %323 = vmatprep.subr.mxu0 0.0
    %324 = vmatpush1.msra.mxu0 %v288
    %325 = vmatprep.subr.mxu0 0.0
    %326 = vmatpush1.msra.mxu0 %v289
    %327 = vmatprep.subr.mxu0 0.0
    %328 = vmatpush1.msra.mxu0 %v290
    %329 = vmatprep.subr.mxu0 0.0
    %330 = vmatpush1.msra.mxu0 %v291
    %331 = vmatprep.subr.mxu0 0.0
    %332 = vmatpush1.msra.mxu0 0.0
    %333 = vmatprep.subr.mxu0 0.0
    %334 = vmatpush1.msra.mxu0 0.0
    %335 = vmatprep.subr.mxu0 0.0
    %336 = vmatpush1.msra.mxu0 0.0
    %337 = vmatprep.subr.mxu0 0.0
    %338 = vmatpush1.msra.mxu0 0.0
    %339 = vmatprep.subr.mxu0 0.0
    %340 = vmatpush1.msra.mxu0 0.0
    %341 = vmatprep.subr.mxu0 0.0
    %342 = vmatpush1.msra.mxu0 0.0
    %343 = vmatprep.subr.mxu0 0.0
    %344 = vmatpush1.msra.mxu0 0.0
    %345 = vmatprep.subr.mxu0 0.0
    %346 = vmatpush1.msra.mxu0 0.0
    %347 = vmatprep.subr.mxu0 0.0
    %348 = vmatpush1.msra.mxu0 0.0
    %349 = vmatprep.subr.mxu0 0.0
    %350 = vmatpush1.msra.mxu0 0.0
    %351 = vmatprep.subr.mxu0 0.0
    %352 = vmatpush1.msra.mxu0 0.0
    %353 = vmatprep.subr.mxu0 0.0
    %354 = vmatpush1.msra.mxu0 0.0
    %355 = vmatprep.subr.mxu0 0.0
    %356 = vmatpush1.msra.mxu0 0.0
    %357 = vmatprep.subr.mxu0 0.0
    %358 = vmatpush1.msra.mxu0 0.0
    %359 = vmatprep.subr.mxu0 0.0
    %360 = vmatpush1.msra.mxu0 0.0
    %361 = vmatprep.subr.mxu0 0.0
    %362 = vmatpush1.msra.mxu0 0.0
    %363 = vmatprep.mubr.f32.mxu0 0.0
    %364 = vmatmul.mubr.f32.gmra.mrb[0].mxu0 %v268
    %v365 = vpop.f32.mrb[0].mxu0
    %v366 = vadd.f32 %v297, %v365
    %v367 = vpop.f32.mrb[0].mxu0
    %368 = vmatprep.mubr.f32.mxu0 0.0
    %369 = vmatmul.mubr.f32.gmra.mrb[0].mxu0 %v273
    %v370 = vpop.f32.mrb[0].mxu0
    %v371 = vadd.f32 %v297, %v370
    %v372 = vpop.f32.mrb[0].mxu0
    %373 = vdwg.mxu0
    %v374 = vmax.f32 %v366, 0.0
    %v375 = vmax.f32 %v371, 0.0
    %v376 = vld [vmem:[#allocation8] sm:$0xff]
    %v377 = vld [vmem:[#allocation8 + $0x8] sm:$0xff]
    %379 = vset.pattern.permute.xlu0 0
    %380 = vperm.xlu0 %379, %v376
    %v381 = vpop.permute.xlu0 %380
    %384 = vset.pattern.permute.xlu0 0
    %385 = vperm.xlu0 %384, %v377
    %v386 = vpop.permute.xlu0 %385
    %v388 = vmul.f32 %v374, %v381
    %v389 = vmul.f32 %v375, %v386
    %390 = vst [vmem:[#allocation13] sm:$0xff] %v388
    %391 = vst [vmem:[#allocation13 + $0x8] sm:$0xff] %v389
    // Predicated region
    $region50: #{tpu_custom_call.1} parent=1 // pred_check
      _
    $region51: #{tpu_custom_call.1} parent=1 // pred_check_branch
      %393 = sbr.rel (0) target = $region53
    $region52: #{tpu_custom_call.1} parent=1 // pred_region
      %s395 = ssub.s32 256, 256
      %396 = vsyncadd [#allocation4], %s395
      %s397 = sshll.u32 [#allocation13], 4
      %s398 = int_to_ptr.vmem [resolvable:$true] %s397
      %403 = dma.vmem_to_hbm [thread:$0]  %s398, 256, %s6, [#allocation4], 128, 128, 8
    $region53: #{tpu_custom_call.1} parent=1 // pred_fallthru
      _
    // Predicated region
    $region54: #{tpu_custom_call.1} parent=1 // pred_check
      _
    $region55: #{tpu_custom_call.1} parent=1 // pred_check_branch
      %405 = sbr.rel (0) target = $region57
    $region56: #{tpu_custom_call.1} parent=1 // pred_region
      %406 = dma.done [#allocation4], 256
    $region57: #{tpu_custom_call.1} parent=1 // pred_fallthru
      _
    %407 = vsyncpa [#allocation3], 1
    %408 = vsyncpa [#allocation6], 1
    %409 = vsyncpa [#allocation9], 1
    %410 = vsyncpa [#allocation12], 1
    %411 = vsyncpa [#allocation4], 1

</llo_original>
